<compile_context>
chip_gen: v6e
topology: v6e:2x2x1
jax: 0.10.0
libtpu: 0.0.40
codegen_flags: <defaults>
</compile_context>

<pallas_src>
import math
import numpy as np
import jax
import jax.numpy as jnp
from jax import lax
from jax.experimental import pallas as pl
from jax.experimental.pallas import tpu as pltpu

INV_SQRT8 = float(2.0 ** -1.5)   # (1/sqrt(2))**3 — only non-unit Haar magnitude


# ----------------------------------------------------------------------------
# Pallas kernel factory
# ----------------------------------------------------------------------------
def make_idwt3d_kernel(W: int, TD: int, CHUNK: int, HW: int):
    """Kernel over blocks: 8 inputs (1, TD, HW); output (1, 8, TD, HW)."""
    n_chunks = TD // CHUNK

    def kernel(lll_ref, llh_ref, lhl_ref, lhh_ref,
               hll_ref, hlh_ref, hhl_ref, hhh_ref, o_ref):
        d_base = pl.program_id(1) * TD   # global depth offset of this block

        # Loop-invariant lane-position masks over the flattened H*W axis.
        hw = lax.broadcasted_iota(jnp.int32, (CHUNK, HW), 1)
        w0 = (hw % W) == 0               # w == 0 columns
        h0 = hw < W                      # h == 0 rows
        row = lax.broadcasted_iota(jnp.int32, (CHUNK, 1), 0)

        def even(lo, hi, at0):
            # parity-0 combine; replicate pad makes index 0 use 2*lo instead of lo+hi
            return lo + jnp.where(at0, lo, hi)

        def body(c, carry):
            off = pl.multiple_of(c * CHUNK, CHUNK)
            sl = pl.ds(off, CHUNK)

            x_lll = lll_ref[0, sl, :].astype(jnp.float32)
            x_llh = llh_ref[0, sl, :].astype(jnp.float32)
            x_lhl = lhl_ref[0, sl, :].astype(jnp.float32)
            x_lhh = lhh_ref[0, sl, :].astype(jnp.float32)
            x_hll = hll_ref[0, sl, :].astype(jnp.float32)
            x_hlh = hlh_ref[0, sl, :].astype(jnp.float32)
            x_hhl = hhl_ref[0, sl, :].astype(jnp.float32)
            x_hhh = hhh_ref[0, sl, :].astype(jnp.float32)

            d0 = (d_base + off + row) == 0   # (CHUNK, 1): global d == 0 rows

            # ---- W-axis combine (3rd filter letter): pairs (*L, *H) ----
            a_ll_e = even(x_lll, x_llh, w0); a_ll_o = x_lll - x_llh
            a_lh_e = even(x_lhl, x_lhh, w0); a_lh_o = x_lhl - x_lhh
            a_hl_e = even(x_hll, x_hlh, w0); a_hl_o = x_hll - x_hlh
            a_hh_e = even(x_hhl, x_hhh, w0); a_hh_o = x_hhl - x_hhh

            # ---- H-axis combine (2nd filter letter) ----  b_{fd}_{rh rw}
            b_l_ee = even(a_ll_e, a_lh_e, h0); b_l_oe = a_ll_e - a_lh_e
            b_l_eo = even(a_ll_o, a_lh_o, h0); b_l_oo = a_ll_o - a_lh_o
            b_h_ee = even(a_hl_e, a_hh_e, h0); b_h_oe = a_hl_e - a_hh_e
            b_h_eo = even(a_hl_o, a_hh_o, h0); b_h_oo = a_hl_o - a_hh_o

            # ---- D-axis combine (1st filter letter); parity p = rd*4 + rh*2 + rw ----
            ys = (
                even(b_l_ee, b_h_ee, d0),   # p=0 (0,0,0)
                even(b_l_eo, b_h_eo, d0),   # p=1 (0,0,1)
                even(b_l_oe, b_h_oe, d0),   # p=2 (0,1,0)
                even(b_l_oo, b_h_oo, d0),   # p=3 (0,1,1)
                b_l_ee - b_h_ee,            # p=4 (1,0,0)
                b_l_eo - b_h_eo,            # p=5 (1,0,1)
                b_l_oe - b_h_oe,            # p=6 (1,1,0)
                b_l_oo - b_h_oo,            # p=7 (1,1,1)
            )
            for p in range(8):
                o_ref[0, p, sl, :] = (ys[p] * INV_SQRT8).astype(o_ref.dtype)
            return carry

        lax.fori_loop(0, n_chunks, body, 0)

    return kernel


# ----------------------------------------------------------------------------
# Depth-tile choice: bound per-grid-step VMEM (incl. double buffering) to ~8 MiB
# so it fits every generation's default scoped-VMEM limit (important on v7x).
# ----------------------------------------------------------------------------
def _choose_depth_tile(D: int, HW: int, itemsize: int = 4) -> int:
    budget = 8 * 1024 * 1024
    # (8 inputs + 8 parity outputs) * 2 buffers * TD*HW*itemsize
    step_bytes = lambda td: 32 * td * HW * itemsize
    if step_bytes(D) <= budget:
        return D
    best = None
    td = 8
    while td < D:
        if D % td == 0 and step_bytes(td) <= budget:
            best = td          # keep the largest divisor that fits
        td += 8
    return best if best is not None else D   # fallback: full depth (always legal)


# ----------------------------------------------------------------------------
# Wrapper
# ----------------------------------------------------------------------------
@jax.jit
def idwt_3d(LLL, LLH, LHL, LHH, HLL, HLH, HHL, HHH):
    subbands = (LLL, LLH, LHL, LHH, HLL, HLH, HHL, HHH)
    N, C, D, H, W = LLL.shape
    for sb in subbands:
        assert sb.shape == LLL.shape
    NC = N * C
    HW = H * W

    # Free reshapes (merge contiguous axes) — no data movement, no zero-inflation.
    flat = [sb.reshape(NC, D, HW) for sb in subbands]

    TD = _choose_depth_tile(D, HW, jnp.dtype(LLL.dtype).itemsize)
    CHUNK = 8 if (TD >= 8 and TD % 8 == 0) else TD
    n_dt = D // TD

    kernel = make_idwt3d_kernel(W=W, TD=TD, CHUNK=CHUNK, HW=HW)

    in_spec = pl.BlockSpec((1, TD, HW), lambda nc, dt: (nc, dt, 0))
    out = pl.pallas_call(
        kernel,
        out_shape=jax.ShapeDtypeStruct((NC, 8, D, HW), LLL.dtype),
        grid_spec=pltpu.PrefetchScalarGridSpec(
            num_scalar_prefetch=0,
            grid=(NC, n_dt),
            in_specs=[in_spec] * 8,
            out_specs=pl.BlockSpec((1, 8, TD, HW), lambda nc, dt: (nc, 0, dt, 0)),
        ),
        compiler_params=pltpu.CompilerParams(
            dimension_semantics=("parallel", "parallel"),
        ),
    )(*flat)

    # Interleave parities:  out[nc, rd*4+rh*2+rw, d, h*W+w] -> y[n, c, 2d+rd, 2h+rh, 2w+rw]
    out = out.reshape(N, C, 2, 2, 2, D, H, W)
    out = out.transpose(0, 1, 5, 2, 6, 3, 7, 4)   # (N, C, D, rd, H, rh, W, rw)
    return out.reshape(N, C, 2 * D, 2 * H, 2 * W)


# ----------------------------------------------------------------------------
# Pure-JAX reference (direct translation of the PyTorch forward)
# ----------------------------------------------------------------------------
def haar_filters():
    s = 1.0 / math.sqrt(2.0)
    fl = jnp.array([s, s], dtype=jnp.float32)     # pywt 'haar' dec_lo
    fh = jnp.array([-s, s], dtype=jnp.float32)    # pywt 'haar' dec_hi
    combos = [(fl, fl, fl), (fl, fl, fh), (fl, fh, fl), (fl, fh, fh),
              (fh, fl, fl), (fh, fl, fh), (fh, fh, fl), (fh, fh, fh)]
    return jnp.stack(
        [a[:, None, None] * b[None, :, None] * c[None, None, :] for a, b, c in combos],
        axis=0,
    )  # (8, 2, 2, 2)


def upsample_and_pad(x):
    N, C, D, H, W = x.shape
    up = jnp.zeros((N, C, 2 * D, 2 * H, 2 * W), dtype=x.dtype)
    up = up.at[:, :, ::2, ::2, ::2].set(x)
    return jnp.pad(up, ((0, 0), (0, 0), (1, 0), (1, 0), (1, 0)), mode="edge")


@jax.jit
def idwt_3d_reference(LLL, LLH, LHL, LHH, HLL, HLH, HHL, HHH):
    subbands = [LLL, LLH, LHL, LHH, HLL, HLH, HHL, HHH]
    N, C, D, H, W = LLL.shape
    Do, Ho, Wo = 2 * D, 2 * H, 2 * W
    filt3 = haar_filters()
    acc = jnp.zeros((N, C, Do, Ho, Wo), jnp.float32)
    for s, sb in enumerate(subbands):
        xp = upsample_and_pad(sb)
        for i in range(2):
            for j in range(2):
                for k in range(2):
                    acc = acc + xp[:, :, i:i + Do, j:j + Ho, k:k + Wo] * filt3[s, i, j, k]
    return acc.astype(LLL.dtype)


if __name__ == "__main__":
    key = jax.random.PRNGKey(0)
    N, C, D, H, W = 2, 4, 16, 16, 16
    keys = jax.random.split(key, 8)
    subbands = [jax.random.normal(k, (N, C, D, H, W), dtype=jnp.float32) for k in keys]

    out = idwt_3d(*subbands)
    out = jax.block_until_ready(out)

    ref = idwt_3d_reference(*subbands)
    ref = jax.block_until_ready(ref)

    np.testing.assert_allclose(np.asarray(out), np.asarray(ref), rtol=1e-5, atol=1e-5)
    assert out.shape == (N, C, 2 * D, 2 * H, 2 * W)

    print("KERNEL_OK")
</pallas_src>

<mosaic_0001>
module attributes {stable_mosaic.version = 11 : i64} {
  func.func @kernel(%arg0: i32, %arg1: i32, %arg2: memref<1x16x256xf32, #tpu.memory_space<vmem>>, %arg3: memref<1x16x256xf32, #tpu.memory_space<vmem>>, %arg4: memref<1x16x256xf32, #tpu.memory_space<vmem>>, %arg5: memref<1x16x256xf32, #tpu.memory_space<vmem>>, %arg6: memref<1x16x256xf32, #tpu.memory_space<vmem>>, %arg7: memref<1x16x256xf32, #tpu.memory_space<vmem>>, %arg8: memref<1x16x256xf32, #tpu.memory_space<vmem>>, %arg9: memref<1x16x256xf32, #tpu.memory_space<vmem>>, %arg10: memref<1x8x16x256xf32, #tpu.memory_space<vmem>>) attributes {dimension_semantics = [#tpu.dimension_semantics<parallel>, #tpu.dimension_semantics<parallel>], iteration_bounds = array<i64: 8, 1>, scalar_prefetch = 0 : i64, scratch_operands = 0 : i64, tpu.core_type = #tpu.core_type<tc>, window_params = [{transform_indices = @transform_0, window_bounds = array<i64: 1, 16, 256>}, {transform_indices = @transform_1, window_bounds = array<i64: 1, 16, 256>}, {transform_indices = @transform_2, window_bounds = array<i64: 1, 16, 256>}, {transform_indices = @transform_3, window_bounds = array<i64: 1, 16, 256>}, {transform_indices = @transform_4, window_bounds = array<i64: 1, 16, 256>}, {transform_indices = @transform_5, window_bounds = array<i64: 1, 16, 256>}, {transform_indices = @transform_6, window_bounds = array<i64: 1, 16, 256>}, {transform_indices = @transform_7, window_bounds = array<i64: 1, 16, 256>}, {transform_indices = @transform_8, window_bounds = array<i64: 1, 8, 16, 256>}]} {
    %c16_i32 = arith.constant 16 : i32
    %0 = arith.muli %arg1, %c16_i32 : i32
    %1 = tpu.iota {dimensions = array<i32: 1>} : vector<8x256xi32>
    %c16_i32_0 = arith.constant 16 : i32
    %c0_i32 = arith.constant 0 : i32
    %2 = arith.cmpi eq, %c16_i32_0, %c0_i32 : i32
    %c1_i32 = arith.constant 1 : i32
    %3 = arith.select %2, %c1_i32, %c16_i32_0 : i32
    %4 = vector.broadcast %3 : i32 to vector<8x256xi32>
    %5 = arith.remsi %1, %4 : vector<8x256xi32>
    %c0_i32_1 = arith.constant 0 : i32
    %6 = vector.broadcast %c0_i32_1 : i32 to vector<8x256xi32>
    %7 = arith.cmpi ne, %5, %6 : vector<8x256xi32>
    %c0_i32_2 = arith.constant 0 : i32
    %8 = vector.broadcast %c0_i32_2 : i32 to vector<8x256xi32>
    %9 = arith.cmpi slt, %5, %8 : vector<8x256xi32>
    %c0_i32_3 = arith.constant 0 : i32
    %10 = arith.cmpi slt, %3, %c0_i32_3 : i32
    %11 = vector.broadcast %10 : i1 to vector<8x256xi1>
    %12 = vector.broadcast %11 : vector<8x256xi1> to vector<8x256xi1>
    %13 = arith.xori %9, %12 : vector<8x256xi1>
    %14 = arith.andi %13, %7 : vector<8x256xi1>
    %15 = vector.broadcast %3 : i32 to vector<8x256xi32>
    %16 = arith.addi %5, %15 : vector<8x256xi32>
    %17 = arith.select %14, %16, %5 : vector<8x256xi1>, vector<8x256xi32>
    %c0_i32_4 = arith.constant 0 : i32
    %18 = vector.broadcast %c0_i32_4 : i32 to vector<8x256xi32>
    %19 = arith.cmpi eq, %17, %18 : vector<8x256xi32>
    %c16_i32_5 = arith.constant 16 : i32
    %20 = vector.broadcast %c16_i32_5 : i32 to vector<8x256xi32>
    %21 = arith.cmpi slt, %1, %20 : vector<8x256xi32>
    %22 = tpu.iota {dimensions = array<i32: 0>} : vector<8x1xi32>
    %c0_i32_6 = arith.constant 0 : i32
    %c2_i32 = arith.constant 2 : i32
    %23 = arith.addi %c0_i32_6, %c2_i32 : i32
    %c1_i32_7 = arith.constant 1 : i32
    scf.for %arg11 = %c0_i32_6 to %23 step %c1_i32_7  : i32 {
      %c8_i32 = arith.constant 8 : i32
      %24 = arith.muli %arg11, %c8_i32 : i32
      %25 = tpu.assume_multiple %24, 8 : i32
      %c0 = arith.constant 0 : index
      %26 = arith.index_cast %25 : i32 to index
      %c0_9 = arith.constant 0 : index
      %27 = vector.load %arg2[%c0, %26, %c0_9] : memref<1x16x256xf32, #tpu.memory_space<vmem>>, vector<1x8x256xf32>
      %28 = vector.shape_cast %27 : vector<1x8x256xf32> to vector<8x256xf32>
      %c0_10 = arith.constant 0 : index
      %29 = arith.index_cast %25 : i32 to index
      %c0_11 = arith.constant 0 : index
      %30 = vector.load %arg3[%c0_10, %29, %c0_11] : memref<1x16x256xf32, #tpu.memory_space<vmem>>, vector<1x8x256xf32>
      %31 = vector.shape_cast %30 : vector<1x8x256xf32> to vector<8x256xf32>
      %c0_12 = arith.constant 0 : index
      %32 = arith.index_cast %25 : i32 to index
      %c0_13 = arith.constant 0 : index
      %33 = vector.load %arg4[%c0_12, %32, %c0_13] : memref<1x16x256xf32, #tpu.memory_space<vmem>>, vector<1x8x256xf32>
      %34 = vector.shape_cast %33 : vector<1x8x256xf32> to vector<8x256xf32>
      %c0_14 = arith.constant 0 : index
      %35 = arith.index_cast %25 : i32 to index
      %c0_15 = arith.constant 0 : index
      %36 = vector.load %arg5[%c0_14, %35, %c0_15] : memref<1x16x256xf32, #tpu.memory_space<vmem>>, vector<1x8x256xf32>
      %37 = vector.shape_cast %36 : vector<1x8x256xf32> to vector<8x256xf32>
      %c0_16 = arith.constant 0 : index
      %38 = arith.index_cast %25 : i32 to index
      %c0_17 = arith.constant 0 : index
      %39 = vector.load %arg6[%c0_16, %38, %c0_17] : memref<1x16x256xf32, #tpu.memory_space<vmem>>, vector<1x8x256xf32>
      %40 = vector.shape_cast %39 : vector<1x8x256xf32> to vector<8x256xf32>
      %c0_18 = arith.constant 0 : index
      %41 = arith.index_cast %25 : i32 to index
      %c0_19 = arith.constant 0 : index
      %42 = vector.load %arg7[%c0_18, %41, %c0_19] : memref<1x16x256xf32, #tpu.memory_space<vmem>>, vector<1x8x256xf32>
      %43 = vector.shape_cast %42 : vector<1x8x256xf32> to vector<8x256xf32>
      %c0_20 = arith.constant 0 : index
      %44 = arith.index_cast %25 : i32 to index
      %c0_21 = arith.constant 0 : index
      %45 = vector.load %arg8[%c0_20, %44, %c0_21] : memref<1x16x256xf32, #tpu.memory_space<vmem>>, vector<1x8x256xf32>
      %46 = vector.shape_cast %45 : vector<1x8x256xf32> to vector<8x256xf32>
      %c0_22 = arith.constant 0 : index
      %47 = arith.index_cast %25 : i32 to index
      %c0_23 = arith.constant 0 : index
      %48 = vector.load %arg9[%c0_22, %47, %c0_23] : memref<1x16x256xf32, #tpu.memory_space<vmem>>, vector<1x8x256xf32>
      %49 = vector.shape_cast %48 : vector<1x8x256xf32> to vector<8x256xf32>
      %50 = arith.addi %0, %25 : i32
      %51 = vector.broadcast %50 : i32 to vector<8x1xi32>
      %52 = arith.addi %51, %22 : vector<8x1xi32>
      %c0_i32_24 = arith.constant 0 : i32
      %53 = vector.broadcast %c0_i32_24 : i32 to vector<8x1xi32>
      %54 = arith.cmpi eq, %52, %53 : vector<8x1xi32>
      %55 = arith.select %19, %28, %31 : vector<8x256xi1>, vector<8x256xf32>
      %56 = arith.addf %28, %55 : vector<8x256xf32>
      %57 = arith.subf %28, %31 : vector<8x256xf32>
      %58 = arith.select %19, %34, %37 : vector<8x256xi1>, vector<8x256xf32>
      %59 = arith.addf %34, %58 : vector<8x256xf32>
      %60 = arith.subf %34, %37 : vector<8x256xf32>
      %61 = arith.select %19, %40, %43 : vector<8x256xi1>, vector<8x256xf32>
      %62 = arith.addf %40, %61 : vector<8x256xf32>
      %63 = arith.subf %40, %43 : vector<8x256xf32>
      %64 = arith.select %19, %46, %49 : vector<8x256xi1>, vector<8x256xf32>
      %65 = arith.addf %46, %64 : vector<8x256xf32>
      %66 = arith.subf %46, %49 : vector<8x256xf32>
      %67 = arith.select %21, %56, %59 : vector<8x256xi1>, vector<8x256xf32>
      %68 = arith.addf %56, %67 : vector<8x256xf32>
      %69 = arith.subf %56, %59 : vector<8x256xf32>
      %70 = arith.select %21, %57, %60 : vector<8x256xi1>, vector<8x256xf32>
      %71 = arith.addf %57, %70 : vector<8x256xf32>
      %72 = arith.subf %57, %60 : vector<8x256xf32>
      %73 = arith.select %21, %62, %65 : vector<8x256xi1>, vector<8x256xf32>
      %74 = arith.addf %62, %73 : vector<8x256xf32>
      %75 = arith.subf %62, %65 : vector<8x256xf32>
      %76 = arith.select %21, %63, %66 : vector<8x256xi1>, vector<8x256xf32>
      %77 = arith.addf %63, %76 : vector<8x256xf32>
      %78 = arith.subf %63, %66 : vector<8x256xf32>
      %79 = vector.shape_cast %54 : vector<8x1xi1> to vector<8x1xi1>
      %80 = vector.broadcast %79 : vector<8x1xi1> to vector<8x256xi1>
      %81 = arith.select %80, %68, %74 : vector<8x256xi1>, vector<8x256xf32>
      %82 = arith.addf %68, %81 : vector<8x256xf32>
      %83 = vector.shape_cast %54 : vector<8x1xi1> to vector<8x1xi1>
      %84 = vector.broadcast %83 : vector<8x1xi1> to vector<8x256xi1>
      %85 = arith.select %84, %71, %77 : vector<8x256xi1>, vector<8x256xf32>
      %86 = arith.addf %71, %85 : vector<8x256xf32>
      %87 = vector.shape_cast %54 : vector<8x1xi1> to vector<8x1xi1>
      %88 = vector.broadcast %87 : vector<8x1xi1> to vector<8x256xi1>
      %89 = arith.select %88, %69, %75 : vector<8x256xi1>, vector<8x256xf32>
      %90 = arith.addf %69, %89 : vector<8x256xf32>
      %91 = vector.shape_cast %54 : vector<8x1xi1> to vector<8x1xi1>
      %92 = vector.broadcast %91 : vector<8x1xi1> to vector<8x256xi1>
      %93 = arith.select %92, %72, %78 : vector<8x256xi1>, vector<8x256xf32>
      %94 = arith.addf %72, %93 : vector<8x256xf32>
      %95 = arith.subf %68, %74 : vector<8x256xf32>
      %96 = arith.subf %71, %77 : vector<8x256xf32>
      %97 = arith.subf %69, %75 : vector<8x256xf32>
      %98 = arith.subf %72, %78 : vector<8x256xf32>
      %cst = arith.constant 0.353553385 : f32
      %99 = vector.broadcast %cst : f32 to vector<8x256xf32>
      %100 = arith.mulf %82, %99 : vector<8x256xf32>
      %c0_25 = arith.constant 0 : index
      %c0_26 = arith.constant 0 : index
      %101 = arith.index_cast %25 : i32 to index
      %c0_27 = arith.constant 0 : index
      %102 = vector.load %arg10[%c0_25, %c0_26, %101, %c0_27] : memref<1x8x16x256xf32, #tpu.memory_space<vmem>>, vector<1x1x8x256xf32>
      %103 = vector.shape_cast %102 : vector<1x1x8x256xf32> to vector<8x256xf32>
      %104 = vector.shape_cast %100 : vector<8x256xf32> to vector<1x1x8x256xf32>
      tpu.vector_store %arg10[%c0_25, %c0_26, %101, %c0_27], %104 {strides = array<i32>} : memref<1x8x16x256xf32, #tpu.memory_space<vmem>>, vector<1x1x8x256xf32>,
      %cst_28 = arith.constant 0.353553385 : f32
      %105 = vector.broadcast %cst_28 : f32 to vector<8x256xf32>
      %106 = arith.mulf %86, %105 : vector<8x256xf32>
      %c0_29 = arith.constant 0 : index
      %c1 = arith.constant 1 : index
      %107 = arith.index_cast %25 : i32 to index
      %c0_30 = arith.constant 0 : index
      %108 = vector.load %arg10[%c0_29, %c1, %107, %c0_30] : memref<1x8x16x256xf32, #tpu.memory_space<vmem>>, vector<1x1x8x256xf32>
      %109 = vector.shape_cast %108 : vector<1x1x8x256xf32> to vector<8x256xf32>
      %110 = vector.shape_cast %106 : vector<8x256xf32> to vector<1x1x8x256xf32>
      tpu.vector_store %arg10[%c0_29, %c1, %107, %c0_30], %110 {strides = array<i32>} : memref<1x8x16x256xf32, #tpu.memory_space<vmem>>, vector<1x1x8x256xf32>,
      %cst_31 = arith.constant 0.353553385 : f32
      %111 = vector.broadcast %cst_31 : f32 to vector<8x256xf32>
      %112 = arith.mulf %90, %111 : vector<8x256xf32>
      %c0_32 = arith.constant 0 : index
      %c2 = arith.constant 2 : index
      %113 = arith.index_cast %25 : i32 to index
      %c0_33 = arith.constant 0 : index
      %114 = vector.load %arg10[%c0_32, %c2, %113, %c0_33] : memref<1x8x16x256xf32, #tpu.memory_space<vmem>>, vector<1x1x8x256xf32>
      %115 = vector.shape_cast %114 : vector<1x1x8x256xf32> to vector<8x256xf32>
      %116 = vector.shape_cast %112 : vector<8x256xf32> to vector<1x1x8x256xf32>
      tpu.vector_store %arg10[%c0_32, %c2, %113, %c0_33], %116 {strides = array<i32>} : memref<1x8x16x256xf32, #tpu.memory_space<vmem>>, vector<1x1x8x256xf32>,
      %cst_34 = arith.constant 0.353553385 : f32
      %117 = vector.broadcast %cst_34 : f32 to vector<8x256xf32>
      %118 = arith.mulf %94, %117 : vector<8x256xf32>
      %c0_35 = arith.constant 0 : index
      %c3 = arith.constant 3 : index
      %119 = arith.index_cast %25 : i32 to index
      %c0_36 = arith.constant 0 : index
      %120 = vector.load %arg10[%c0_35, %c3, %119, %c0_36] : memref<1x8x16x256xf32, #tpu.memory_space<vmem>>, vector<1x1x8x256xf32>
      %121 = vector.shape_cast %120 : vector<1x1x8x256xf32> to vector<8x256xf32>
      %122 = vector.shape_cast %118 : vector<8x256xf32> to vector<1x1x8x256xf32>
      tpu.vector_store %arg10[%c0_35, %c3, %119, %c0_36], %122 {strides = array<i32>} : memref<1x8x16x256xf32, #tpu.memory_space<vmem>>, vector<1x1x8x256xf32>,
      %cst_37 = arith.constant 0.353553385 : f32
      %123 = vector.broadcast %cst_37 : f32 to vector<8x256xf32>
      %124 = arith.mulf %95, %123 : vector<8x256xf32>
      %c0_38 = arith.constant 0 : index
      %c4 = arith.constant 4 : index
      %125 = arith.index_cast %25 : i32 to index
      %c0_39 = arith.constant 0 : index
      %126 = vector.load %arg10[%c0_38, %c4, %125, %c0_39] : memref<1x8x16x256xf32, #tpu.memory_space<vmem>>, vector<1x1x8x256xf32>
      %127 = vector.shape_cast %126 : vector<1x1x8x256xf32> to vector<8x256xf32>
      %128 = vector.shape_cast %124 : vector<8x256xf32> to vector<1x1x8x256xf32>
      tpu.vector_store %arg10[%c0_38, %c4, %125, %c0_39], %128 {strides = array<i32>} : memref<1x8x16x256xf32, #tpu.memory_space<vmem>>, vector<1x1x8x256xf32>,
      %cst_40 = arith.constant 0.353553385 : f32
      %129 = vector.broadcast %cst_40 : f32 to vector<8x256xf32>
      %130 = arith.mulf %96, %129 : vector<8x256xf32>
      %c0_41 = arith.constant 0 : index
      %c5 = arith.constant 5 : index
      %131 = arith.index_cast %25 : i32 to index
      %c0_42 = arith.constant 0 : index
      %132 = vector.load %arg10[%c0_41, %c5, %131, %c0_42] : memref<1x8x16x256xf32, #tpu.memory_space<vmem>>, vector<1x1x8x256xf32>
      %133 = vector.shape_cast %132 : vector<1x1x8x256xf32> to vector<8x256xf32>
      %134 = vector.shape_cast %130 : vector<8x256xf32> to vector<1x1x8x256xf32>
      tpu.vector_store %arg10[%c0_41, %c5, %131, %c0_42], %134 {strides = array<i32>} : memref<1x8x16x256xf32, #tpu.memory_space<vmem>>, vector<1x1x8x256xf32>,
      %cst_43 = arith.constant 0.353553385 : f32
      %135 = vector.broadcast %cst_43 : f32 to vector<8x256xf32>
      %136 = arith.mulf %97, %135 : vector<8x256xf32>
      %c0_44 = arith.constant 0 : index
      %c6 = arith.constant 6 : index
      %137 = arith.index_cast %25 : i32 to index
      %c0_45 = arith.constant 0 : index
      %138 = vector.load %arg10[%c0_44, %c6, %137, %c0_45] : memref<1x8x16x256xf32, #tpu.memory_space<vmem>>, vector<1x1x8x256xf32>
      %139 = vector.shape_cast %138 : vector<1x1x8x256xf32> to vector<8x256xf32>
      %140 = vector.shape_cast %136 : vector<8x256xf32> to vector<1x1x8x256xf32>
      tpu.vector_store %arg10[%c0_44, %c6, %137, %c0_45], %140 {strides = array<i32>} : memref<1x8x16x256xf32, #tpu.memory_space<vmem>>, vector<1x1x8x256xf32>,
      %cst_46 = arith.constant 0.353553385 : f32
      %141 = vector.broadcast %cst_46 : f32 to vector<8x256xf32>
      %142 = arith.mulf %98, %141 : vector<8x256xf32>
      %c0_47 = arith.constant 0 : index
      %c7 = arith.constant 7 : index
      %143 = arith.index_cast %25 : i32 to index
      %c0_48 = arith.constant 0 : index
      %144 = vector.load %arg10[%c0_47, %c7, %143, %c0_48] : memref<1x8x16x256xf32, #tpu.memory_space<vmem>>, vector<1x1x8x256xf32>
      %145 = vector.shape_cast %144 : vector<1x1x8x256xf32> to vector<8x256xf32>
      %146 = vector.shape_cast %142 : vector<8x256xf32> to vector<1x1x8x256xf32>
      tpu.vector_store %arg10[%c0_47, %c7, %143, %c0_48], %146 {strides = array<i32>} : memref<1x8x16x256xf32, #tpu.memory_space<vmem>>, vector<1x1x8x256xf32>,
    }
    %c2_i32_8 = arith.constant 2 : i32
    return
  }
  func.func @transform_0(%arg0: i32, %arg1: i32) -> (i32, i32, i32) {
    %c0_i32 = arith.constant 0 : i32
    %c0_i32_0 = arith.constant 0 : i32
    return %arg0, %arg1, %c0_i32 : i32, i32, i32
  }
  func.func @transform_1(%arg0: i32, %arg1: i32) -> (i32, i32, i32) {
    %c0_i32 = arith.constant 0 : i32
    %c0_i32_0 = arith.constant 0 : i32
    return %arg0, %arg1, %c0_i32 : i32, i32, i32
  }
  func.func @transform_2(%arg0: i32, %arg1: i32) -> (i32, i32, i32) {
    %c0_i32 = arith.constant 0 : i32
    %c0_i32_0 = arith.constant 0 : i32
    return %arg0, %arg1, %c0_i32 : i32, i32, i32
  }
  func.func @transform_3(%arg0: i32, %arg1: i32) -> (i32, i32, i32) {
    %c0_i32 = arith.constant 0 : i32
    %c0_i32_0 = arith.constant 0 : i32
    return %arg0, %arg1, %c0_i32 : i32, i32, i32
  }
  func.func @transform_4(%arg0: i32, %arg1: i32) -> (i32, i32, i32) {
    %c0_i32 = arith.constant 0 : i32
    %c0_i32_0 = arith.constant 0 : i32
    return %arg0, %arg1, %c0_i32 : i32, i32, i32
  }
  func.func @transform_5(%arg0: i32, %arg1: i32) -> (i32, i32, i32) {
    %c0_i32 = arith.constant 0 : i32
    %c0_i32_0 = arith.constant 0 : i32
    return %arg0, %arg1, %c0_i32 : i32, i32, i32
  }
  func.func @transform_6(%arg0: i32, %arg1: i32) -> (i32, i32, i32) {
    %c0_i32 = arith.constant 0 : i32
    %c0_i32_0 = arith.constant 0 : i32
    return %arg0, %arg1, %c0_i32 : i32, i32, i32
  }
  func.func @transform_7(%arg0: i32, %arg1: i32) -> (i32, i32, i32) {
    %c0_i32 = arith.constant 0 : i32
    %c0_i32_0 = arith.constant 0 : i32
    return %arg0, %arg1, %c0_i32 : i32, i32, i32
  }
  func.func @transform_8(%arg0: i32, %arg1: i32) -> (i32, i32, i32, i32) {
    %c0_i32 = arith.constant 0 : i32
    %c0_i32_0 = arith.constant 0 : i32
    %c0_i32_1 = arith.constant 0 : i32
    return %arg0, %c0_i32, %arg1, %c0_i32_0 : i32, i32, i32, i32
  }
}

</mosaic_0001>

<llo_original>
// kernel: idwt_3d.1
$region0: #{idwt_3d.1}
  #allocation0 [shape = 'u32[]', space=smem, size = 0x4, offset = 0x4, fixed_abs, tag = 'smem constant byte address 0x4 - core index']
  #allocation1 [shape = 'u32[144,128]{1,0:T(1,128)}', space=vmem, size = 0x12000, scoped, tag = 'internal scratch']
  %s0 = inlined_call_operand.vmem [shape: f32[8,16,256], index: 0, kind: input, shape index: {}]
  %s1 = inlined_call_operand.vmem [shape: f32[8,16,256], index: 1, kind: input, shape index: {}]
  %s2 = inlined_call_operand.vmem [shape: f32[8,16,256], index: 2, kind: input, shape index: {}]
  %s3 = inlined_call_operand.vmem [shape: f32[8,16,256], index: 3, kind: input, shape index: {}]
  %s4 = inlined_call_operand.vmem [shape: f32[8,16,256], index: 4, kind: input, shape index: {}]
  %s5 = inlined_call_operand.vmem [shape: f32[8,16,256], index: 5, kind: input, shape index: {}]
  %s6 = inlined_call_operand.vmem [shape: f32[8,16,256], index: 6, kind: input, shape index: {}]
  %s7 = inlined_call_operand.vmem [shape: f32[8,16,256], index: 7, kind: input, shape index: {}]
  %s8 = inlined_call_operand.vmem [shape: f32[8,8,16,256], index: 8, kind: output, shape index: {}]
  %s9 = sld [smem:[#allocation0]]
  $region72: #{idwt_3d.1} parent=0
    _
  %s11 = ssub.s32 1, %s9
  %s12 = scalar_select 0, %s11, %s9
  loop: start=0, step=1, limit=10
  $region2: #{idwt_3d.1} parent=0 // loop_pre_header
    _
  $region3: #{idwt_3d.1} parent=0 // loop_header
    %s14 = sphi 0, %s18
    %p15 = scmp.ge.s32.totalorder %s14, 10
    %s21 = sphi 0, %s33
    %s22 = sphi 0, %s29
    %s23 = sphi 0, %s21
    %s24 = sphi 0, %s22
    %s25 = sphi 0, %s23
    %s26 = sphi 0, %s24
    %s38 = sphi 0, %s40
    %s41 = sphi 0, %s38
    %s42 = sphi 0, %s41
    %s58 = sphi 0, %s42
    %s66 = sphi 0, %s68
    %s69 = sphi 0, %s66
    %s70 = sphi 0, %s69
    %s86 = sphi 0, %s70
    %s94 = sphi 0, %s96
    %s97 = sphi 0, %s94
    %s98 = sphi 0, %s97
    %s114 = sphi 0, %s98
    %s122 = sphi 0, %s124
    %s125 = sphi 0, %s122
    %s126 = sphi 0, %s125
    %s142 = sphi 0, %s126
    %s150 = sphi 0, %s152
    %s153 = sphi 0, %s150
    %s154 = sphi 0, %s153
    %s170 = sphi 0, %s154
    %s178 = sphi 0, %s180
    %s181 = sphi 0, %s178
    %s182 = sphi 0, %s181
    %s198 = sphi 0, %s182
    %s206 = sphi 0, %s208
    %s209 = sphi 0, %s206
    %s210 = sphi 0, %s209
    %s226 = sphi 0, %s210
    %s234 = sphi 0, %s236
    %s237 = sphi 0, %s234
    %s238 = sphi 0, %s237
    %s254 = sphi 0, %s238
    %s262 = sphi 0, %s264
    %s265 = sphi 0, %s262
    %s266 = sphi 0, %s265
    %s282 = sphi 0, %s266
  $region4: #{idwt_3d.1} parent=0 // loop_header_branch
    %17 = sbr.rel (%p15) target = $region8
  $region5: #{idwt_3d.1} parent=0 // loop_body
    %s19 = ssub.s32 %s14, 1
    %s20 = ssub.s32 %s14, 2
    %s27 = sadd.s32 1, %s22
    %p28 = scmp.ge.s32.totalorder %s27, 1
    %s29 = scalar_select %p28, 0, %s27
    %s30 = sadd.s32 1, %s21
    %s31 = scalar_select %p28, %s30, %s21
    %p32 = scmp.ge.s32.totalorder %s31, 8
    %s33 = scalar_select %p32, 0, %s31
    %s34 = ssub.s32 %s21, %s33
    %s35 = ssub.s32 %s22, %s29
    %s36 = sor.u32 %s34, %s35
    %p37 = scmp.eq.s32.totalorder %s36, 0
    %s39 = sadd.s32 %s38, 1
    %s40 = scalar_select %p37, %s38, %s39
    %p43 = pneg %p37
    %p44 = scmp.eq.s32.totalorder %s14, 7
    %p45 = por %p43, %p44
    %p46 = scmp.ne.s32.totalorder %s38, %s41
    %p47 = scmp.eq.s32.totalorder %s14, 0
    %p48 = por %p46, %p47
    %p49 = scmp.ne.s32.totalorder %s38, %s41
    %p50 = scmp.eq.s32.totalorder %s19, 7
    %p51 = por %p49, %p50
    %p52 = scmp.ne.s32.totalorder %s41, %s42
    %p53 = scmp.eq.s32.totalorder %s19, 0
    %p54 = por %p52, %p53
    %p55 = scmp.ne.s32.totalorder %s41, %s42
    %p56 = scmp.eq.s32.totalorder %s20, 7
    %p57 = por %p55, %p56
    %p59 = scmp.ne.s32.totalorder %s42, %s58
    %p60 = scmp.eq.s32.totalorder %s20, 0
    %p61 = por %p59, %p60
    %s62 = ssub.s32 %s21, %s33
    %s63 = ssub.s32 %s22, %s29
    %s64 = sor.u32 %s62, %s63
    %p65 = scmp.eq.s32.totalorder %s64, 0
    %s67 = sadd.s32 %s66, 1
    %s68 = scalar_select %p65, %s66, %s67
    %p71 = pneg %p65
    %p72 = scmp.eq.s32.totalorder %s14, 7
    %p73 = por %p71, %p72
    %p74 = scmp.ne.s32.totalorder %s66, %s69
    %p75 = scmp.eq.s32.totalorder %s14, 0
    %p76 = por %p74, %p75
    %p77 = scmp.ne.s32.totalorder %s66, %s69
    %p78 = scmp.eq.s32.totalorder %s19, 7
    %p79 = por %p77, %p78
    %p80 = scmp.ne.s32.totalorder %s69, %s70
    %p81 = scmp.eq.s32.totalorder %s19, 0
    %p82 = por %p80, %p81
    %p83 = scmp.ne.s32.totalorder %s69, %s70
    %p84 = scmp.eq.s32.totalorder %s20, 7
    %p85 = por %p83, %p84
    %p87 = scmp.ne.s32.totalorder %s70, %s86
    %p88 = scmp.eq.s32.totalorder %s20, 0
    %p89 = por %p87, %p88
    %s90 = ssub.s32 %s21, %s33
    %s91 = ssub.s32 %s22, %s29
    %s92 = sor.u32 %s90, %s91
    %p93 = scmp.eq.s32.totalorder %s92, 0
    %s95 = sadd.s32 %s94, 1
    %s96 = scalar_select %p93, %s94, %s95
    %p99 = pneg %p93
    %p100 = scmp.eq.s32.totalorder %s14, 7
    %p101 = por %p99, %p100
    %p102 = scmp.ne.s32.totalorder %s94, %s97
    %p103 = scmp.eq.s32.totalorder %s14, 0
    %p104 = por %p102, %p103
    %p105 = scmp.ne.s32.totalorder %s94, %s97
    %p106 = scmp.eq.s32.totalorder %s19, 7
    %p107 = por %p105, %p106
    %p108 = scmp.ne.s32.totalorder %s97, %s98
    %p109 = scmp.eq.s32.totalorder %s19, 0
    %p110 = por %p108, %p109
    %p111 = scmp.ne.s32.totalorder %s97, %s98
    %p112 = scmp.eq.s32.totalorder %s20, 7
    %p113 = por %p111, %p112
    %p115 = scmp.ne.s32.totalorder %s98, %s114
    %p116 = scmp.eq.s32.totalorder %s20, 0
    %p117 = por %p115, %p116
    %s118 = ssub.s32 %s21, %s33
    %s119 = ssub.s32 %s22, %s29
    %s120 = sor.u32 %s118, %s119
    %p121 = scmp.eq.s32.totalorder %s120, 0
    %s123 = sadd.s32 %s122, 1
    %s124 = scalar_select %p121, %s122, %s123
    %p127 = pneg %p121
    %p128 = scmp.eq.s32.totalorder %s14, 7
    %p129 = por %p127, %p128
    %p130 = scmp.ne.s32.totalorder %s122, %s125
    %p131 = scmp.eq.s32.totalorder %s14, 0
    %p132 = por %p130, %p131
    %p133 = scmp.ne.s32.totalorder %s122, %s125
    %p134 = scmp.eq.s32.totalorder %s19, 7
    %p135 = por %p133, %p134
    %p136 = scmp.ne.s32.totalorder %s125, %s126
    %p137 = scmp.eq.s32.totalorder %s19, 0
    %p138 = por %p136, %p137
    %p139 = scmp.ne.s32.totalorder %s125, %s126
    %p140 = scmp.eq.s32.totalorder %s20, 7
    %p141 = por %p139, %p140
    %p143 = scmp.ne.s32.totalorder %s126, %s142
    %p144 = scmp.eq.s32.totalorder %s20, 0
    %p145 = por %p143, %p144
    %s146 = ssub.s32 %s21, %s33
    %s147 = ssub.s32 %s22, %s29
    %s148 = sor.u32 %s146, %s147
    %p149 = scmp.eq.s32.totalorder %s148, 0
    %s151 = sadd.s32 %s150, 1
    %s152 = scalar_select %p149, %s150, %s151
    %p155 = pneg %p149
    %p156 = scmp.eq.s32.totalorder %s14, 7
    %p157 = por %p155, %p156
    %p158 = scmp.ne.s32.totalorder %s150, %s153
    %p159 = scmp.eq.s32.totalorder %s14, 0
    %p160 = por %p158, %p159
    %p161 = scmp.ne.s32.totalorder %s150, %s153
    %p162 = scmp.eq.s32.totalorder %s19, 7
    %p163 = por %p161, %p162
    %p164 = scmp.ne.s32.totalorder %s153, %s154
    %p165 = scmp.eq.s32.totalorder %s19, 0
    %p166 = por %p164, %p165
    %p167 = scmp.ne.s32.totalorder %s153, %s154
    %p168 = scmp.eq.s32.totalorder %s20, 7
    %p169 = por %p167, %p168
    %p171 = scmp.ne.s32.totalorder %s154, %s170
    %p172 = scmp.eq.s32.totalorder %s20, 0
    %p173 = por %p171, %p172
    %s174 = ssub.s32 %s21, %s33
    %s175 = ssub.s32 %s22, %s29
    %s176 = sor.u32 %s174, %s175
    %p177 = scmp.eq.s32.totalorder %s176, 0
    %s179 = sadd.s32 %s178, 1
    %s180 = scalar_select %p177, %s178, %s179
    %p183 = pneg %p177
    %p184 = scmp.eq.s32.totalorder %s14, 7
    %p185 = por %p183, %p184
    %p186 = scmp.ne.s32.totalorder %s178, %s181
    %p187 = scmp.eq.s32.totalorder %s14, 0
    %p188 = por %p186, %p187
    %p189 = scmp.ne.s32.totalorder %s178, %s181
    %p190 = scmp.eq.s32.totalorder %s19, 7
    %p191 = por %p189, %p190
    %p192 = scmp.ne.s32.totalorder %s181, %s182
    %p193 = scmp.eq.s32.totalorder %s19, 0
    %p194 = por %p192, %p193
    %p195 = scmp.ne.s32.totalorder %s181, %s182
    %p196 = scmp.eq.s32.totalorder %s20, 7
    %p197 = por %p195, %p196
    %p199 = scmp.ne.s32.totalorder %s182, %s198
    %p200 = scmp.eq.s32.totalorder %s20, 0
    %p201 = por %p199, %p200
    %s202 = ssub.s32 %s21, %s33
    %s203 = ssub.s32 %s22, %s29
    %s204 = sor.u32 %s202, %s203
    %p205 = scmp.eq.s32.totalorder %s204, 0
    %s207 = sadd.s32 %s206, 1
    %s208 = scalar_select %p205, %s206, %s207
    %p211 = pneg %p205
    %p212 = scmp.eq.s32.totalorder %s14, 7
    %p213 = por %p211, %p212
    %p214 = scmp.ne.s32.totalorder %s206, %s209
    %p215 = scmp.eq.s32.totalorder %s14, 0
    %p216 = por %p214, %p215
    %p217 = scmp.ne.s32.totalorder %s206, %s209
    %p218 = scmp.eq.s32.totalorder %s19, 7
    %p219 = por %p217, %p218
    %p220 = scmp.ne.s32.totalorder %s209, %s210
    %p221 = scmp.eq.s32.totalorder %s19, 0
    %p222 = por %p220, %p221
    %p223 = scmp.ne.s32.totalorder %s209, %s210
    %p224 = scmp.eq.s32.totalorder %s20, 7
    %p225 = por %p223, %p224
    %p227 = scmp.ne.s32.totalorder %s210, %s226
    %p228 = scmp.eq.s32.totalorder %s20, 0
    %p229 = por %p227, %p228
    %s230 = ssub.s32 %s21, %s33
    %s231 = ssub.s32 %s22, %s29
    %s232 = sor.u32 %s230, %s231
    %p233 = scmp.eq.s32.totalorder %s232, 0
    %s235 = sadd.s32 %s234, 1
    %s236 = scalar_select %p233, %s234, %s235
    %p239 = pneg %p233
    %p240 = scmp.eq.s32.totalorder %s14, 7
    %p241 = por %p239, %p240
    %p242 = scmp.ne.s32.totalorder %s234, %s237
    %p243 = scmp.eq.s32.totalorder %s14, 0
    %p244 = por %p242, %p243
    %p245 = scmp.ne.s32.totalorder %s234, %s237
    %p246 = scmp.eq.s32.totalorder %s19, 7
    %p247 = por %p245, %p246
    %p248 = scmp.ne.s32.totalorder %s237, %s238
    %p249 = scmp.eq.s32.totalorder %s19, 0
    %p250 = por %p248, %p249
    %p251 = scmp.ne.s32.totalorder %s237, %s238
    %p252 = scmp.eq.s32.totalorder %s20, 7
    %p253 = por %p251, %p252
    %p255 = scmp.ne.s32.totalorder %s238, %s254
    %p256 = scmp.eq.s32.totalorder %s20, 0
    %p257 = por %p255, %p256
    %s258 = ssub.s32 %s21, %s33
    %s259 = ssub.s32 %s22, %s29
    %s260 = sor.u32 %s258, %s259
    %p261 = scmp.eq.s32.totalorder %s260, 0
    %s263 = sadd.s32 %s262, 1
    %s264 = scalar_select %p261, %s262, %s263
    %p267 = pneg %p261
    %p268 = scmp.eq.s32.totalorder %s14, 7
    %p269 = por %p267, %p268
    %p270 = scmp.ne.s32.totalorder %s262, %s265
    %p271 = scmp.eq.s32.totalorder %s14, 0
    %p272 = por %p270, %p271
    %p273 = scmp.ne.s32.totalorder %s262, %s265
    %p274 = scmp.eq.s32.totalorder %s19, 7
    %p275 = por %p273, %p274
    %p276 = scmp.ne.s32.totalorder %s265, %s266
    %p277 = scmp.eq.s32.totalorder %s19, 0
    %p278 = por %p276, %p277
    %p279 = scmp.ne.s32.totalorder %s265, %s266
    %p280 = scmp.eq.s32.totalorder %s20, 7
    %p281 = por %p279, %p280
    %p283 = scmp.ne.s32.totalorder %s266, %s282
    %p284 = scmp.eq.s32.totalorder %s20, 0
    %p285 = por %p283, %p284
    %p286 = scmp.le.s32.totalorder 1, %s14
    %p287 = scmp.lt.s32.totalorder %s14, 9
    %p288 = pnand %p286, %p287
    %p289 = pneg %p288
    // Predicated region
    $region9: #{idwt_3d.1} parent=5 // pred_check
      _
    $region10: #{idwt_3d.1} parent=5 // pred_check_branch
      %291 = sbr.rel (%p288) target = $region12
    $region11: #{idwt_3d.1} parent=5 // pred_region
      %s292 = ssub.s32 %s14, 1
    $region12: #{idwt_3d.1} parent=5 // pred_fallthru
      _
    %p293 = scmp.lt.s32.totalorder %s14, 8
    // Predicated region
    $region13: #{idwt_3d.1} parent=5 // pred_check
      %p294 = pneg %p293
    $region14: #{idwt_3d.1} parent=5 // pred_check_branch
      %296 = sbr.rel (%p294) target = $region16
    $region15: #{idwt_3d.1} parent=5 // pred_region
      // Predicated region
      $region17: #{idwt_3d.1} parent=15 // pred_check
        %p297 = pneg %p48
      $region18: #{idwt_3d.1} parent=15 // pred_check_branch
        %299 = sbr.rel (%p297) target = $region20
      $region19: #{idwt_3d.1} parent=15 // pred_region
        %s300 = smul.u32 2, %s22
        %p301 = scmp.lt.s32.totalorder %s21, 7
        %s302 = scalar_select %p301, %s21, 7
        %p303 = scmp.lt.s32.totalorder %s300, 1
        %s304 = scalar_select %p303, %s300, 1
        %s305 = smul.addr %s304, 2
        %s306 = smul.addr %s302, 4
        %s307 = sadd.s32 %s305, %s306
        %s308 = smul.addr %s307, 8
        %s309 = scalar_lea.vmem %s0, %s308
        %s310 = smul.u32 2, %s22
      $region20: #{idwt_3d.1} parent=15 // pred_fallthru
        _
      // Predicated region
      $region21: #{idwt_3d.1} parent=15 // pred_check
        %p311 = pneg %p76
      $region22: #{idwt_3d.1} parent=15 // pred_check_branch
        %313 = sbr.rel (%p311) target = $region24
      $region23: #{idwt_3d.1} parent=15 // pred_region
        %s314 = smul.u32 2, %s22
        %p315 = scmp.lt.s32.totalorder %s21, 7
        %s316 = scalar_select %p315, %s21, 7
        %p317 = scmp.lt.s32.totalorder %s314, 1
        %s318 = scalar_select %p317, %s314, 1
        %s319 = smul.addr %s318, 2
        %s320 = smul.addr %s316, 4
        %s321 = sadd.s32 %s319, %s320
        %s322 = smul.addr %s321, 8
        %s323 = scalar_lea.vmem %s1, %s322
        %s324 = smul.u32 2, %s22
      $region24: #{idwt_3d.1} parent=15 // pred_fallthru
        _
      // Predicated region
      $region25: #{idwt_3d.1} parent=15 // pred_check
        %p325 = pneg %p104
      $region26: #{idwt_3d.1} parent=15 // pred_check_branch
        %327 = sbr.rel (%p325) target = $region28
      $region27: #{idwt_3d.1} parent=15 // pred_region
        %s328 = smul.u32 2, %s22
        %p329 = scmp.lt.s32.totalorder %s21, 7
        %s330 = scalar_select %p329, %s21, 7
        %p331 = scmp.lt.s32.totalorder %s328, 1
        %s332 = scalar_select %p331, %s328, 1
        %s333 = smul.addr %s332, 2
        %s334 = smul.addr %s330, 4
        %s335 = sadd.s32 %s333, %s334
        %s336 = smul.addr %s335, 8
        %s337 = scalar_lea.vmem %s2, %s336
        %s338 = smul.u32 2, %s22
      $region28: #{idwt_3d.1} parent=15 // pred_fallthru
        _
      // Predicated region
      $region29: #{idwt_3d.1} parent=15 // pred_check
        %p339 = pneg %p132
      $region30: #{idwt_3d.1} parent=15 // pred_check_branch
        %341 = sbr.rel (%p339) target = $region32
      $region31: #{idwt_3d.1} parent=15 // pred_region
        %s342 = smul.u32 2, %s22
        %p343 = scmp.lt.s32.totalorder %s21, 7
        %s344 = scalar_select %p343, %s21, 7
        %p345 = scmp.lt.s32.totalorder %s342, 1
        %s346 = scalar_select %p345, %s342, 1
        %s347 = smul.addr %s346, 2
        %s348 = smul.addr %s344, 4
        %s349 = sadd.s32 %s347, %s348
        %s350 = smul.addr %s349, 8
        %s351 = scalar_lea.vmem %s3, %s350
        %s352 = smul.u32 2, %s22
      $region32: #{idwt_3d.1} parent=15 // pred_fallthru
        _
      // Predicated region
      $region33: #{idwt_3d.1} parent=15 // pred_check
        %p353 = pneg %p160
      $region34: #{idwt_3d.1} parent=15 // pred_check_branch
        %355 = sbr.rel (%p353) target = $region36
      $region35: #{idwt_3d.1} parent=15 // pred_region
        %s356 = smul.u32 2, %s22
        %p357 = scmp.lt.s32.totalorder %s21, 7
        %s358 = scalar_select %p357, %s21, 7
        %p359 = scmp.lt.s32.totalorder %s356, 1
        %s360 = scalar_select %p359, %s356, 1
        %s361 = smul.addr %s360, 2
        %s362 = smul.addr %s358, 4
        %s363 = sadd.s32 %s361, %s362
        %s364 = smul.addr %s363, 8
        %s365 = scalar_lea.vmem %s4, %s364
        %s366 = smul.u32 2, %s22
      $region36: #{idwt_3d.1} parent=15 // pred_fallthru
        _
      // Predicated region
      $region37: #{idwt_3d.1} parent=15 // pred_check
        %p367 = pneg %p188
      $region38: #{idwt_3d.1} parent=15 // pred_check_branch
        %369 = sbr.rel (%p367) target = $region40
      $region39: #{idwt_3d.1} parent=15 // pred_region
        %s370 = smul.u32 2, %s22
        %p371 = scmp.lt.s32.totalorder %s21, 7
        %s372 = scalar_select %p371, %s21, 7
        %p373 = scmp.lt.s32.totalorder %s370, 1
        %s374 = scalar_select %p373, %s370, 1
        %s375 = smul.addr %s374, 2
        %s376 = smul.addr %s372, 4
        %s377 = sadd.s32 %s375, %s376
        %s378 = smul.addr %s377, 8
        %s379 = scalar_lea.vmem %s5, %s378
        %s380 = smul.u32 2, %s22
      $region40: #{idwt_3d.1} parent=15 // pred_fallthru
        _
      // Predicated region
      $region41: #{idwt_3d.1} parent=15 // pred_check
        %p381 = pneg %p216
      $region42: #{idwt_3d.1} parent=15 // pred_check_branch
        %383 = sbr.rel (%p381) target = $region44
      $region43: #{idwt_3d.1} parent=15 // pred_region
        %s384 = smul.u32 2, %s22
        %p385 = scmp.lt.s32.totalorder %s21, 7
        %s386 = scalar_select %p385, %s21, 7
        %p387 = scmp.lt.s32.totalorder %s384, 1
        %s388 = scalar_select %p387, %s384, 1
        %s389 = smul.addr %s388, 2
        %s390 = smul.addr %s386, 4
        %s391 = sadd.s32 %s389, %s390
        %s392 = smul.addr %s391, 8
        %s393 = scalar_lea.vmem %s6, %s392
        %s394 = smul.u32 2, %s22
      $region44: #{idwt_3d.1} parent=15 // pred_fallthru
        _
      // Predicated region
      $region45: #{idwt_3d.1} parent=15 // pred_check
        %p395 = pneg %p244
      $region46: #{idwt_3d.1} parent=15 // pred_check_branch
        %397 = sbr.rel (%p395) target = $region48
      $region47: #{idwt_3d.1} parent=15 // pred_region
        %s398 = smul.u32 2, %s22
        %p399 = scmp.lt.s32.totalorder %s21, 7
        %s400 = scalar_select %p399, %s21, 7
        %p401 = scmp.lt.s32.totalorder %s398, 1
        %s402 = scalar_select %p401, %s398, 1
        %s403 = smul.addr %s402, 2
        %s404 = smul.addr %s400, 4
        %s405 = sadd.s32 %s403, %s404
        %s406 = smul.addr %s405, 8
        %s407 = scalar_lea.vmem %s7, %s406
        %s408 = smul.u32 2, %s22
      $region48: #{idwt_3d.1} parent=15 // pred_fallthru
        _
    $region16: #{idwt_3d.1} parent=5 // pred_fallthru
      _
    %p409 = scmp.le.s32.totalorder 1, %s14
    %p410 = scmp.lt.s32.totalorder %s14, 9
    %p411 = pnand %p409, %p410
    %p412 = pneg %p411
    // Predicated region
    $region49: #{idwt_3d.1} parent=5 // pred_check
      _
    $region50: #{idwt_3d.1} parent=5 // pred_check_branch
      %414 = sbr.rel (%p411) target = $region52
    $region51: #{idwt_3d.1} parent=5 // pred_region
      %s415 = ssub.s32 %s14, 1
      %s416 = smul.u32 2, %s24
      %p417 = scmp.lt.s32.totalorder %s23, 7
      %s418 = scalar_select %p417, %s23, 7
      %p419 = scmp.lt.s32.totalorder %s416, 1
      %s420 = scalar_select %p419, %s416, 1
      %s421 = smul.addr %s420, 2
      %s422 = smul.addr %s418, 4
      %s423 = sadd.s32 %s421, %s422
      %s424 = smul.addr %s423, 8
      %s425 = scalar_lea.vmem %s0, %s424
      %p426 = pneg %p54
      %p427 = pneg %p51
      %s428 = smul.u32 2, %s24
      %p429 = scmp.lt.s32.totalorder %s23, 7
      %s430 = scalar_select %p429, %s23, 7
      %p431 = scmp.lt.s32.totalorder %s428, 1
      %s432 = scalar_select %p431, %s428, 1
      %s433 = smul.addr %s432, 2
      %s434 = smul.addr %s430, 4
      %s435 = sadd.s32 %s433, %s434
      %s436 = smul.addr %s435, 8
      %s437 = scalar_lea.vmem %s1, %s436
      %p438 = pneg %p82
      %p439 = pneg %p79
      %s440 = smul.u32 2, %s24
      %p441 = scmp.lt.s32.totalorder %s23, 7
      %s442 = scalar_select %p441, %s23, 7
      %p443 = scmp.lt.s32.totalorder %s440, 1
      %s444 = scalar_select %p443, %s440, 1
      %s445 = smul.addr %s444, 2
      %s446 = smul.addr %s442, 4
      %s447 = sadd.s32 %s445, %s446
      %s448 = smul.addr %s447, 8
      %s449 = scalar_lea.vmem %s2, %s448
      %p450 = pneg %p110
      %p451 = pneg %p107
      %s452 = smul.u32 2, %s24
      %p453 = scmp.lt.s32.totalorder %s23, 7
      %s454 = scalar_select %p453, %s23, 7
      %p455 = scmp.lt.s32.totalorder %s452, 1
      %s456 = scalar_select %p455, %s452, 1
      %s457 = smul.addr %s456, 2
      %s458 = smul.addr %s454, 4
      %s459 = sadd.s32 %s457, %s458
      %s460 = smul.addr %s459, 8
      %s461 = scalar_lea.vmem %s3, %s460
      %p462 = pneg %p138
      %p463 = pneg %p135
      %s464 = smul.u32 2, %s24
      %p465 = scmp.lt.s32.totalorder %s23, 7
      %s466 = scalar_select %p465, %s23, 7
      %p467 = scmp.lt.s32.totalorder %s464, 1
      %s468 = scalar_select %p467, %s464, 1
      %s469 = smul.addr %s468, 2
      %s470 = smul.addr %s466, 4
      %s471 = sadd.s32 %s469, %s470
      %s472 = smul.addr %s471, 8
      %s473 = scalar_lea.vmem %s4, %s472
      %p474 = pneg %p166
      %p475 = pneg %p163
      %s476 = smul.u32 2, %s24
      %p477 = scmp.lt.s32.totalorder %s23, 7
      %s478 = scalar_select %p477, %s23, 7
      %p479 = scmp.lt.s32.totalorder %s476, 1
      %s480 = scalar_select %p479, %s476, 1
      %s481 = smul.addr %s480, 2
      %s482 = smul.addr %s478, 4
      %s483 = sadd.s32 %s481, %s482
      %s484 = smul.addr %s483, 8
      %s485 = scalar_lea.vmem %s5, %s484
      %p486 = pneg %p194
      %p487 = pneg %p191
      %s488 = smul.u32 2, %s24
      %p489 = scmp.lt.s32.totalorder %s23, 7
      %s490 = scalar_select %p489, %s23, 7
      %p491 = scmp.lt.s32.totalorder %s488, 1
      %s492 = scalar_select %p491, %s488, 1
      %s493 = smul.addr %s492, 2
      %s494 = smul.addr %s490, 4
      %s495 = sadd.s32 %s493, %s494
      %s496 = smul.addr %s495, 8
      %s497 = scalar_lea.vmem %s6, %s496
      %p498 = pneg %p222
      %p499 = pneg %p219
      %s500 = smul.u32 2, %s24
      %p501 = scmp.lt.s32.totalorder %s23, 7
      %s502 = scalar_select %p501, %s23, 7
      %p503 = scmp.lt.s32.totalorder %s500, 1
      %s504 = scalar_select %p503, %s500, 1
      %s505 = smul.addr %s504, 2
      %s506 = smul.addr %s502, 4
      %s507 = sadd.s32 %s505, %s506
      %s508 = smul.addr %s507, 8
      %s509 = scalar_lea.vmem %s7, %s508
      %p510 = pneg %p250
      %p511 = pneg %p247
      %p512 = pneg %p278
      %p513 = pneg %p275
      %s514 = smul.u32 2, %s24
      %p515 = scmp.lt.s32.totalorder %s23, 7
      %s516 = scalar_select %p515, %s23, 7
      %p517 = scmp.lt.s32.totalorder %s514, 1
      %s518 = scalar_select %p517, %s514, 1
      %s519 = smul.addr %s518, 2
      %s520 = smul.addr %s516, 32
      %s521 = sadd.s32 %s519, %s520
      %s522 = smul.addr %s521, 8
      %s523 = scalar_lea.vmem %s8, %s522
      %s524 = smul.u32 2, %s24
      %p525 = scmp.lt.s32.totalorder %s23, 7
      %s526 = scalar_select %p525, %s23, 7
      %p527 = scmp.lt.s32.totalorder %s524, 1
      %s528 = scalar_select %p527, %s524, 1
      %s529 = smul.addr %s528, 2
      %s530 = smul.addr %s526, 4
      %s531 = sadd.s32 %s529, %s530
      %s532 = smul.addr %s531, 8
      %s533 = scalar_lea.vmem %s0, %s532
      %s534 = smul.u32 2, %s24
      %s535 = smul.u32 2, %s24
      %p536 = scmp.lt.s32.totalorder %s23, 7
      %s537 = scalar_select %p536, %s23, 7
      %p538 = scmp.lt.s32.totalorder %s535, 1
      %s539 = scalar_select %p538, %s535, 1
      %s540 = smul.addr %s539, 2
      %s541 = smul.addr %s537, 4
      %s542 = sadd.s32 %s540, %s541
      %s543 = smul.addr %s542, 8
      %s544 = scalar_lea.vmem %s1, %s543
      %s545 = smul.u32 2, %s24
      %s546 = smul.u32 2, %s24
      %p547 = scmp.lt.s32.totalorder %s23, 7
      %s548 = scalar_select %p547, %s23, 7
      %p549 = scmp.lt.s32.totalorder %s546, 1
      %s550 = scalar_select %p549, %s546, 1
      %s551 = smul.addr %s550, 2
      %s552 = smul.addr %s548, 4
      %s553 = sadd.s32 %s551, %s552
      %s554 = smul.addr %s553, 8
      %s555 = scalar_lea.vmem %s2, %s554
      %s556 = smul.u32 2, %s24
      %s557 = smul.u32 2, %s24
      %p558 = scmp.lt.s32.totalorder %s23, 7
      %s559 = scalar_select %p558, %s23, 7
      %p560 = scmp.lt.s32.totalorder %s557, 1
      %s561 = scalar_select %p560, %s557, 1
      %s562 = smul.addr %s561, 2
      %s563 = smul.addr %s559, 4
      %s564 = sadd.s32 %s562, %s563
      %s565 = smul.addr %s564, 8
      %s566 = scalar_lea.vmem %s3, %s565
      %s567 = smul.u32 2, %s24
      %s568 = smul.u32 2, %s24
      %p569 = scmp.lt.s32.totalorder %s23, 7
      %s570 = scalar_select %p569, %s23, 7
      %p571 = scmp.lt.s32.totalorder %s568, 1
      %s572 = scalar_select %p571, %s568, 1
      %s573 = smul.addr %s572, 2
      %s574 = smul.addr %s570, 4
      %s575 = sadd.s32 %s573, %s574
      %s576 = smul.addr %s575, 8
      %s577 = scalar_lea.vmem %s4, %s576
      %s578 = smul.u32 2, %s24
      %s579 = smul.u32 2, %s24
      %p580 = scmp.lt.s32.totalorder %s23, 7
      %s581 = scalar_select %p580, %s23, 7
      %p582 = scmp.lt.s32.totalorder %s579, 1
      %s583 = scalar_select %p582, %s579, 1
      %s584 = smul.addr %s583, 2
      %s585 = smul.addr %s581, 4
      %s586 = sadd.s32 %s584, %s585
      %s587 = smul.addr %s586, 8
      %s588 = scalar_lea.vmem %s5, %s587
      %s589 = smul.u32 2, %s24
      %s590 = smul.u32 2, %s24
      %p591 = scmp.lt.s32.totalorder %s23, 7
      %s592 = scalar_select %p591, %s23, 7
      %p593 = scmp.lt.s32.totalorder %s590, 1
      %s594 = scalar_select %p593, %s590, 1
      %s595 = smul.addr %s594, 2
      %s596 = smul.addr %s592, 4
      %s597 = sadd.s32 %s595, %s596
      %s598 = smul.addr %s597, 8
      %s599 = scalar_lea.vmem %s6, %s598
      %s600 = smul.u32 2, %s24
      %s601 = smul.u32 2, %s24
      %p602 = scmp.lt.s32.totalorder %s23, 7
      %s603 = scalar_select %p602, %s23, 7
      %p604 = scmp.lt.s32.totalorder %s601, 1
      %s605 = scalar_select %p604, %s601, 1
      %s606 = smul.addr %s605, 2
      %s607 = smul.addr %s603, 4
      %s608 = sadd.s32 %s606, %s607
      %s609 = smul.addr %s608, 8
      %s610 = scalar_lea.vmem %s7, %s609
      %s611 = smul.u32 2, %s24
      %s612 = smul.u32 2, %s24
      %p613 = scmp.lt.s32.totalorder %s23, 7
      %s614 = scalar_select %p613, %s23, 7
      %p615 = scmp.lt.s32.totalorder %s612, 1
      %s616 = scalar_select %p615, %s612, 1
      %s617 = smul.addr %s616, 2
      %s618 = smul.addr %s614, 32
      %s619 = sadd.s32 %s617, %s618
      %s620 = smul.addr %s619, 8
      %s621 = scalar_lea.vmem %s8, %s620
      %s622 = smul.u32 2, %s24
      %s623 = smul.u32 %s24, 16
      %v624 = vlaneseq
      %v625 = vand.u32 %v624, 127
      %v626 = vadd.s32 %v625, 128
      %vm627 = vcmp.lt.s32.totalorder %v625, 0
      %v628 = vsub.s32 0, %v625
      %v629 = vsel %vm627, %v628, %v625
      %v630 = vshrl.u32 %v629, 4
      %v631 = vand.u32 %v629, 15
      %v632 = vsub.s32 0, %v631
      %v633 = vsel %vm627, %v632, %v631
      %vm634 = vcmp.lt.s32.totalorder %v626, 0
      %v635 = vsub.s32 0, %v626
      %v636 = vsel %vm634, %v635, %v626
      %v637 = vshrl.u32 %v636, 4
      %v638 = vand.u32 %v636, 15
      %v639 = vsub.s32 0, %v638
      %v640 = vsel %vm634, %v639, %v638
      %vm641 = vcmp.ne.s32.totalorder %v633, 0
      %vm642 = vcmp.ne.s32.totalorder %v640, 0
      %vm643 = vcmp.lt.s32.totalorder %v633, 0
      %vm644 = vcmp.lt.s32.totalorder %v640, 0
      %vm645 = vmand %vm643, %vm641
      %vm646 = vmand %vm644, %vm642
      %v647 = vadd.s32 %v633, 16
      %v648 = vadd.s32 %v640, 16
      %v649 = vsel %vm645, %v647, %v633
      %v650 = vsel %vm646, %v648, %v640
      %vm651 = vcmp.eq.s32.totalorder %v649, 0
      %vm652 = vcmp.eq.s32.totalorder %v650, 0
      %vm653 = vcmp.lt.s32.totalorder %v625, 16
      %vm654 = vcmp.lt.s32.totalorder %v626, 16
      %v655 = vlaneseq
      %v656 = vshrl.u32 %v655, 7
      loop: start=0, step=1, limit=2
      $region53: #{idwt_3d.1} parent=51 // loop_pre_header
        _
      $region54: #{idwt_3d.1} parent=51 // loop_header
        %s658 = sphi 0, %s662
        %p659 = scmp.ge.s32.totalorder %s658, 2
      $region55: #{idwt_3d.1} parent=51 // loop_header_branch
        %661 = sbr.rel (%p659) target = $region59
      $region56: #{idwt_3d.1} parent=51 // loop_body
        %s663 = smul.u32 %s658, 8
        %s664 = sshra.s32 %s663, 3
        %s665 = sand.u32 %s663, 7
        %s666 = smul.u32 %s664, 2
        %s667 = smul.addr %s666, 8
        %s668 = scalar_lea.vmem %s533, %s667
        %v669 = vld [vmem:[%s668] sm:$0xff]
        %v670 = vld [vmem:[%s668 + $0x8] sm:$0xff]
        %s671 = smul.addr %s666, 8
        %s672 = scalar_lea.vmem %s544, %s671
        %v673 = vld [vmem:[%s672] sm:$0xff]
        %v674 = vld [vmem:[%s672 + $0x8] sm:$0xff]
        %s675 = smul.addr %s666, 8
        %s676 = scalar_lea.vmem %s555, %s675
        %v677 = vld [vmem:[%s676] sm:$0xff]
        %v678 = vld [vmem:[%s676 + $0x8] sm:$0xff]
        %s679 = smul.addr %s666, 8
        %s680 = scalar_lea.vmem %s566, %s679
        %v681 = vld [vmem:[%s680] sm:$0xff]
        %v682 = vld [vmem:[%s680 + $0x8] sm:$0xff]
        %s683 = smul.addr %s666, 8
        %s684 = scalar_lea.vmem %s577, %s683
        %v685 = vld [vmem:[%s684] sm:$0xff]
        %v686 = vld [vmem:[%s684 + $0x8] sm:$0xff]
        %s687 = smul.addr %s666, 8
        %s688 = scalar_lea.vmem %s588, %s687
        %v689 = vld [vmem:[%s688] sm:$0xff]
        %v690 = vld [vmem:[%s688 + $0x8] sm:$0xff]
        %s691 = smul.addr %s666, 8
        %s692 = scalar_lea.vmem %s599, %s691
        %v693 = vld [vmem:[%s692] sm:$0xff]
        %v694 = vld [vmem:[%s692 + $0x8] sm:$0xff]
        %s695 = smul.addr %s666, 8
        %s696 = scalar_lea.vmem %s610, %s695
        %v697 = vld [vmem:[%s696] sm:$0xff]
        %v698 = vld [vmem:[%s696 + $0x8] sm:$0xff]
        %s699 = sadd.s32 %s623, %s663
        %v700 = vstv %s699
        %v701 = vadd.s32 %v700, %v656
        %vm702 = vcmp.eq.s32.totalorder %v701, 0
        %v703 = vsel %vm651, %v669, %v673
        %v704 = vsel %vm652, %v670, %v674
        %v705 = vadd.f32 %v669, %v703
        %v706 = vadd.f32 %v670, %v704
        %v707 = vsub.f32 %v669, %v673
        %v708 = vsub.f32 %v670, %v674
        %v709 = vsel %vm651, %v677, %v681
        %v710 = vsel %vm652, %v678, %v682
        %v711 = vadd.f32 %v677, %v709
        %v712 = vadd.f32 %v678, %v710
        %v713 = vsub.f32 %v677, %v681
        %v714 = vsub.f32 %v678, %v682
        %v715 = vsel %vm651, %v685, %v689
        %v716 = vsel %vm652, %v686, %v690
        %v717 = vadd.f32 %v685, %v715
        %v718 = vadd.f32 %v686, %v716
        %v719 = vsub.f32 %v685, %v689
        %v720 = vsub.f32 %v686, %v690
        %v721 = vsel %vm651, %v693, %v697
        %v722 = vsel %vm652, %v694, %v698
        %v723 = vadd.f32 %v693, %v721
        %v724 = vadd.f32 %v694, %v722
        %v725 = vsub.f32 %v693, %v697
        %v726 = vsub.f32 %v694, %v698
        %v727 = vsel %vm653, %v705, %v711
        %v728 = vsel %vm654, %v706, %v712
        %v729 = vadd.f32 %v705, %v727
        %v730 = vadd.f32 %v706, %v728
        %v731 = vsub.f32 %v705, %v711
        %v732 = vsub.f32 %v706, %v712
        %v733 = vsel %vm653, %v707, %v713
        %v734 = vsel %vm654, %v708, %v714
        %v735 = vadd.f32 %v707, %v733
        %v736 = vadd.f32 %v708, %v734
        %v737 = vsub.f32 %v707, %v713
        %v738 = vsub.f32 %v708, %v714
        %v739 = vsel %vm653, %v717, %v723
        %v740 = vsel %vm654, %v718, %v724
        %v741 = vadd.f32 %v717, %v739
        %v742 = vadd.f32 %v718, %v740
        %v743 = vsub.f32 %v717, %v723
        %v744 = vsub.f32 %v718, %v724
        %v745 = vsel %vm653, %v719, %v725
        %v746 = vsel %vm654, %v720, %v726
        %v747 = vadd.f32 %v719, %v745
        %v748 = vadd.f32 %v720, %v746
        %v749 = vsub.f32 %v719, %v725
        %v750 = vsub.f32 %v720, %v726
        %v751 = vsel %vm702, 1, 0
        %vm752 = vcmp.eq.s32.totalorder %v751, 1
        %v753 = vsel %vm752, %v729, %v741
        %v754 = vsel %vm752, %v730, %v742
        %v755 = vadd.f32 %v729, %v753
        %v756 = vadd.f32 %v730, %v754
        %v757 = vsel %vm752, %v735, %v747
        %v758 = vsel %vm752, %v736, %v748
        %v759 = vadd.f32 %v735, %v757
        %v760 = vadd.f32 %v736, %v758
        %v761 = vsel %vm752, %v731, %v743
        %v762 = vsel %vm752, %v732, %v744
        %v763 = vadd.f32 %v731, %v761
        %v764 = vadd.f32 %v732, %v762
        %v765 = vsel %vm752, %v737, %v749
        %v766 = vsel %vm752, %v738, %v750
        %v767 = vadd.f32 %v737, %v765
        %v768 = vadd.f32 %v738, %v766
        %v769 = vsub.f32 %v729, %v741
        %v770 = vsub.f32 %v730, %v742
        %v771 = vsub.f32 %v735, %v747
        %v772 = vsub.f32 %v736, %v748
        %v773 = vsub.f32 %v731, %v743
        %v774 = vsub.f32 %v732, %v744
        %v775 = vsub.f32 %v737, %v749
        %v776 = vsub.f32 %v738, %v750
        %v777 = vmul.f32 %v755, 0.35355338
        %v778 = vmul.f32 %v756, 0.35355338
        %s779 = smul.addr %s666, 8
        %s780 = scalar_lea.vmem %s621, %s779
        %781 = vst [vmem:[%s780] sm:$0xff] %v777
        %782 = vst [vmem:[%s780 + $0x8] sm:$0xff] %v778
        %v783 = vmul.f32 %v759, 0.35355338
        %v784 = vmul.f32 %v760, 0.35355338
        %s785 = sadd.s32 %s666, 4
        %s786 = smul.addr %s785, 8
        %s787 = scalar_lea.vmem %s621, %s786
        %788 = vst [vmem:[%s787] sm:$0xff] %v783
        %789 = vst [vmem:[%s787 + $0x8] sm:$0xff] %v784
        %v790 = vmul.f32 %v763, 0.35355338
        %v791 = vmul.f32 %v764, 0.35355338
        %s792 = sadd.s32 %s666, 8
        %s793 = smul.addr %s792, 8
        %s794 = scalar_lea.vmem %s621, %s793
        %795 = vst [vmem:[%s794] sm:$0xff] %v790
        %796 = vst [vmem:[%s794 + $0x8] sm:$0xff] %v791
        %v797 = vmul.f32 %v767, 0.35355338
        %v798 = vmul.f32 %v768, 0.35355338
        %s799 = sadd.s32 %s666, 12
        %s800 = smul.addr %s799, 8
        %s801 = scalar_lea.vmem %s621, %s800
        %802 = vst [vmem:[%s801] sm:$0xff] %v797
        %803 = vst [vmem:[%s801 + $0x8] sm:$0xff] %v798
        %v804 = vmul.f32 %v769, 0.35355338
        %v805 = vmul.f32 %v770, 0.35355338
        %s806 = sadd.s32 %s666, 16
        %s807 = smul.addr %s806, 8
        %s808 = scalar_lea.vmem %s621, %s807
        %809 = vst [vmem:[%s808] sm:$0xff] %v804
        %810 = vst [vmem:[%s808 + $0x8] sm:$0xff] %v805
        %v811 = vmul.f32 %v771, 0.35355338
        %v812 = vmul.f32 %v772, 0.35355338
        %s813 = sadd.s32 %s666, 20
        %s814 = smul.addr %s813, 8
        %s815 = scalar_lea.vmem %s621, %s814
        %816 = vst [vmem:[%s815] sm:$0xff] %v811
        %817 = vst [vmem:[%s815 + $0x8] sm:$0xff] %v812
        %v818 = vmul.f32 %v773, 0.35355338
        %v819 = vmul.f32 %v774, 0.35355338
        %s820 = sadd.s32 %s666, 24
        %s821 = smul.addr %s820, 8
        %s822 = scalar_lea.vmem %s621, %s821
        %823 = vst [vmem:[%s822] sm:$0xff] %v818
        %824 = vst [vmem:[%s822 + $0x8] sm:$0xff] %v819
        %v825 = vmul.f32 %v775, 0.35355338
        %v826 = vmul.f32 %v776, 0.35355338
        %s827 = sadd.s32 %s666, 28
        %s828 = smul.addr %s827, 8
        %s829 = scalar_lea.vmem %s621, %s828
        %830 = vst [vmem:[%s829] sm:$0xff] %v825
        %831 = vst [vmem:[%s829 + $0x8] sm:$0xff] %v826
      $region57: #{idwt_3d.1} parent=51 // loop_footer
        %s662 = sadd.s32 1, %s658
      $region58: #{idwt_3d.1} parent=51 // loop_footer_branch
        %657 = sbr.rel target = $region54
      $region59: #{idwt_3d.1} parent=51 // loop_exit
        _
      %s832 = smul.u32 2, %s24
      %p833 = scmp.lt.s32.totalorder %s23, 7
      %s834 = scalar_select %p833, %s23, 7
      %p835 = scmp.lt.s32.totalorder %s832, 1
      %s836 = scalar_select %p835, %s832, 1
      %s837 = smul.addr %s836, 2
      %s838 = smul.addr %s834, 32
      %s839 = sadd.s32 %s837, %s838
      %s840 = smul.addr %s839, 8
      %s841 = scalar_lea.vmem %s8, %s840
      // Predicated region
      $region60: #{idwt_3d.1} parent=51 // pred_check
        %p842 = pneg %p275
      $region61: #{idwt_3d.1} parent=51 // pred_check_branch
        %844 = sbr.rel (%p842) target = $region63
      $region62: #{idwt_3d.1} parent=51 // pred_region
        %s845 = smul.u32 2, %s24
      $region63: #{idwt_3d.1} parent=51 // pred_fallthru
        _
    $region52: #{idwt_3d.1} parent=5 // pred_fallthru
      _
    %p846 = scmp.le.s32.totalorder 2, %s14
    // Predicated region
    $region64: #{idwt_3d.1} parent=5 // pred_check
      %p847 = pneg %p846
    $region65: #{idwt_3d.1} parent=5 // pred_check_branch
      %849 = sbr.rel (%p847) target = $region67
    $region66: #{idwt_3d.1} parent=5 // pred_region
      %s850 = ssub.s32 %s14, 2
      // Predicated region
      $region68: #{idwt_3d.1} parent=66 // pred_check
        %p851 = pneg %p281
      $region69: #{idwt_3d.1} parent=66 // pred_check_branch
        %853 = sbr.rel (%p851) target = $region71
      $region70: #{idwt_3d.1} parent=66 // pred_region
        %s854 = smul.u32 2, %s26
        %p855 = scmp.lt.s32.totalorder %s25, 7
        %s856 = scalar_select %p855, %s25, 7
        %p857 = scmp.lt.s32.totalorder %s854, 1
        %s858 = scalar_select %p857, %s854, 1
        %s859 = smul.addr %s858, 2
        %s860 = smul.addr %s856, 32
        %s861 = sadd.s32 %s859, %s860
        %s862 = smul.addr %s861, 8
        %s863 = scalar_lea.vmem %s8, %s862
      $region71: #{idwt_3d.1} parent=66 // pred_fallthru
        _
    $region67: #{idwt_3d.1} parent=5 // pred_fallthru
      _
  $region6: #{idwt_3d.1} parent=0 // loop_footer
    %s18 = sadd.s32 1, %s14
  $region7: #{idwt_3d.1} parent=0 // loop_footer_branch
    %13 = sbr.rel target = $region3
  $region8: #{idwt_3d.1} parent=0 // loop_exit
    _

</llo_original>
